<compile_context>
chip_gen: v7x
topology: tpu7x:2x2x1
jax: 0.10.0
libtpu: 0.0.40
codegen_flags: <defaults>
</compile_context>

<pallas_src>
import jax
import jax.numpy as jnp
from jax import lax
from jax.experimental import pallas as pl
from jax.experimental.pallas import tpu as pltpu


_NEG_BIG = -1e30  # large finite negative pad value (never -inf -> no inf-inf NaN)


def _make_ce_diag_kernel(batch: int, tm: int, tn: int):
    """Online-LSE kernel over one (tm, tn) block of scores.

    grid = (n_row_blocks, n_col_blocks); columns (axis 1) are the reduction axis.
    Writes one (1, 8, 128) lane-dense partial-sum block per row block.
    """

    def kernel(scores_ref, out_ref, m_sc, l_sc, d_sc):
        i = pl.program_id(0)          # row block
        j = pl.program_id(1)          # column block (reduction axis)

        @pl.when(j == 0)
        def _init():
            m_sc[...] = jnp.full_like(m_sc, _NEG_BIG)
            l_sc[...] = jnp.zeros_like(l_sc)
            d_sc[...] = jnp.zeros_like(d_sc)

        # load current block, upcast (bounded to tm*tn*4 bytes by column tiling)
        s = scores_ref[...].astype(jnp.float32)                      # (tm, tn)

        # mask columns beyond the real batch (last column block may run past b)
        gcol = j * tn + lax.broadcasted_iota(jnp.int32, (1, tn), 1)  # (1, tn)
        s = jnp.where(gcol < batch, s, _NEG_BIG)

        # online (streaming) logsumexp update
        m_prev = m_sc[...]                                           # (tm, 1)
        m_new = jnp.maximum(m_prev, jnp.max(s, axis=-1, keepdims=True))
        alpha = jnp.exp(m_prev - m_new)
        p = jnp.exp(s - m_new)
        l_sc[...] = alpha * l_sc[...] + jnp.sum(p, axis=-1, keepdims=True)
        m_sc[...] = m_new

        # diagonal lives only in blocks whose row/column ranges overlap
        @pl.when(jnp.logical_and(i * tm < (j + 1) * tn, j * tn < (i + 1) * tm))
        def _diag():
            grow = i * tm + lax.broadcasted_iota(jnp.int32, (tm, 1), 0)
            is_diag = grow == gcol                                   # (tm, tn)
            d_sc[...] += jnp.sum(jnp.where(is_diag, s, 0.0),
                                 axis=-1, keepdims=True)

        @pl.when(j == pl.num_programs(1) - 1)
        def _finalize():
            lse = m_sc[...] + jnp.log(l_sc[...])                     # (tm, 1)
            grow = i * tm + lax.broadcasted_iota(jnp.int32, (tm, 1), 0)
            # zero out rows that are pure padding (global row >= batch)
            nll = jnp.where(grow < batch, lse - d_sc[...], 0.0)
            out_ref[...] = jnp.broadcast_to(
                jnp.sum(nll), out_ref.shape).astype(jnp.float32)

    return kernel


def tirg_batch_loss(scores: jax.Array) -> jax.Array:
    """Pallas TPU implementation of LossModule.forward. Returns a scalar."""
    assert scores.ndim == 2 and scores.shape[0] == scores.shape[1], \
        "scores must be a square (batch_size, batch_size) matrix"
    b = scores.shape[0]

    # cross_entropy requires floating-point scores; cast integer inputs
    if not jnp.issubdtype(scores.dtype, jnp.floating):
        scores = scores.astype(jnp.float32)
    itemsize = jnp.dtype(scores.dtype).itemsize

    # ---- tile-size selection (generation-agnostic, VMEM-safe on v7x) --------
    if b < 128:
        # single full-array block (block dims == array dims is always legal)
        tm, tn = b, b
    else:
        tn = min(2048, (b // 128) * 128)      # column tile, multiple of 128, <= b
        tm = 128 if b < 512 else 256          # >=2 row blocks for moderate b
    n_rows = pl.cdiv(b, tm)
    n_cols = pl.cdiv(b, tn)

    # VMEM budget: 2x double-buffered input block + ~6 full-tile f32 temporaries
    block_bytes = tm * tn * itemsize
    temp_bytes = 6 * tm * tn * 4
    vmem_limit = int(min(48 << 20,
                         max(16 << 20, 4 * block_bytes + temp_bytes + (2 << 20))))

    partials = pl.pallas_call(
        _make_ce_diag_kernel(b, tm, tn),
        out_shape=jax.ShapeDtypeStruct((n_rows, 8, 128), jnp.float32),
        grid_spec=pltpu.PrefetchScalarGridSpec(
            num_scalar_prefetch=0,
            grid=(n_rows, n_cols),
            in_specs=[pl.BlockSpec((tm, tn), lambda i, j: (i, j))],
            out_specs=pl.BlockSpec((1, 8, 128), lambda i, j: (i, 0, 0)),
            scratch_shapes=[pltpu.VMEM((tm, 1), jnp.float32),   # running max
                            pltpu.VMEM((tm, 1), jnp.float32),   # running sum
                            pltpu.VMEM((tm, 1), jnp.float32)],  # diagonal
        ),
        compiler_params=pltpu.CompilerParams(
            dimension_semantics=("parallel", "arbitrary"),
            vmem_limit_bytes=vmem_limit,
        ),
        cost_estimate=pl.CostEstimate(
            flops=5 * b * b,
            transcendentals=b * b,
            bytes_accessed=b * b * itemsize,
        ),
    )(scores)

    return jnp.sum(partials[:, 0, 0]) / jnp.float32(b)


def _reference_loss(scores: jax.Array) -> jax.Array:
    # pure-JAX reference: cross entropy with diagonal ground-truth labels
    s = scores.astype(jnp.float32)
    lse = jax.nn.logsumexp(s, axis=-1)
    return jnp.mean(lse - jnp.diagonal(s))


if __name__ == "__main__":
    key = jax.random.PRNGKey(0)
    batch_size = 8  # small synthetic batch; scores is (batch, batch)
    scores = jax.random.normal(key, (batch_size, batch_size), dtype=jnp.float32)

    loss = tirg_batch_loss(scores)
    jax.block_until_ready(loss)

    ref = _reference_loss(scores)
    assert jnp.allclose(loss, ref, atol=1e-5, rtol=1e-5), (loss, ref)

    print("KERNEL_OK")
</pallas_src>

<mosaic_0001>
module attributes {stable_mosaic.version = 11 : i64} {
  func.func @kernel(%arg0: i32, %arg1: i32, %arg2: memref<8x8xf32, #tpu.memory_space<vmem>>, %arg3: memref<1x8x128xf32, #tpu.memory_space<vmem>>, %arg4: memref<8x1xf32, #tpu.memory_space<vmem>>, %arg5: memref<8x1xf32, #tpu.memory_space<vmem>>, %arg6: memref<8x1xf32, #tpu.memory_space<vmem>>) attributes {dimension_semantics = [#tpu.dimension_semantics<parallel>, #tpu.dimension_semantics<arbitrary>], iteration_bounds = array<i64: 1, 1>, scalar_prefetch = 0 : i64, scratch_operands = 3 : i64, tpu.core_type = #tpu.core_type<tc>, window_params = [{transform_indices = @transform_0, window_bounds = array<i64: 8, 8>}, {transform_indices = @transform_1, window_bounds = array<i64: 1, 8, 128>}]} {
    %c0_i32 = arith.constant 0 : i32
    %0 = arith.cmpi eq, %arg1, %c0_i32 : i32
    %1 = arith.extui %0 : i1 to i32
    %c0_i32_0 = arith.constant 0 : i32
    %2 = arith.cmpi ne, %1, %c0_i32_0 : i32
    scf.if %2 {
      %cst_21 = arith.constant -1.000000e+30 : f32
      %44 = vector.broadcast %cst_21 : f32 to vector<8x1xf32>
      %c0_22 = arith.constant 0 : index
      %c0_23 = arith.constant 0 : index
      %45 = vector.load %arg4[%c0_22, %c0_23] : memref<8x1xf32, #tpu.memory_space<vmem>>, vector<8x1xf32>
      tpu.vector_store %arg4[%c0_22, %c0_23], %44 {strides = array<i32>} : memref<8x1xf32, #tpu.memory_space<vmem>>, vector<8x1xf32>,
      %cst_24 = arith.constant 0.000000e+00 : f32
      %46 = vector.broadcast %cst_24 : f32 to vector<8x1xf32>
      %c0_25 = arith.constant 0 : index
      %c0_26 = arith.constant 0 : index
      %47 = vector.load %arg5[%c0_25, %c0_26] : memref<8x1xf32, #tpu.memory_space<vmem>>, vector<8x1xf32>
      tpu.vector_store %arg5[%c0_25, %c0_26], %46 {strides = array<i32>} : memref<8x1xf32, #tpu.memory_space<vmem>>, vector<8x1xf32>,
      %cst_27 = arith.constant 0.000000e+00 : f32
      %48 = vector.broadcast %cst_27 : f32 to vector<8x1xf32>
      %c0_28 = arith.constant 0 : index
      %c0_29 = arith.constant 0 : index
      %49 = vector.load %arg6[%c0_28, %c0_29] : memref<8x1xf32, #tpu.memory_space<vmem>>, vector<8x1xf32>
      tpu.vector_store %arg6[%c0_28, %c0_29], %48 {strides = array<i32>} : memref<8x1xf32, #tpu.memory_space<vmem>>, vector<8x1xf32>,
    } else {
    }
    %c0 = arith.constant 0 : index
    %c0_1 = arith.constant 0 : index
    %3 = vector.load %arg2[%c0, %c0_1] : memref<8x8xf32, #tpu.memory_space<vmem>>, vector<8x8xf32>
    %c8_i32 = arith.constant 8 : i32
    %4 = arith.muli %arg1, %c8_i32 : i32
    %5 = tpu.iota {dimensions = array<i32: 1>} : vector<1x8xi32>
    %6 = vector.broadcast %4 : i32 to vector<1x8xi32>
    %7 = arith.addi %6, %5 : vector<1x8xi32>
    %c8_i32_2 = arith.constant 8 : i32
    %8 = vector.broadcast %c8_i32_2 : i32 to vector<1x8xi32>
    %9 = arith.cmpi slt, %7, %8 : vector<1x8xi32>
    %cst = arith.constant -1.000000e+30 : f32
    %10 = vector.shape_cast %9 : vector<1x8xi1> to vector<1x8xi1>
    %11 = vector.broadcast %10 : vector<1x8xi1> to vector<8x8xi1>
    %12 = vector.broadcast %cst : f32 to vector<8x8xf32>
    %13 = arith.select %11, %3, %12 : vector<8x8xi1>, vector<8x8xf32>
    %c0_3 = arith.constant 0 : index
    %c0_4 = arith.constant 0 : index
    %14 = vector.load %arg4[%c0_3, %c0_4] : memref<8x1xf32, #tpu.memory_space<vmem>>, vector<8x1xf32>
    %cst_5 = arith.constant dense<0xFF800000> : vector<8xf32>
    %15 = vector.multi_reduction <maximumf>, %13, %cst_5 [1] : vector<8x8xf32> to vector<8xf32>
    %16 = vector.shape_cast %15 : vector<8xf32> to vector<8x1xf32>
    %17 = arith.maximumf %14, %16 : vector<8x1xf32>
    %18 = arith.subf %14, %17 : vector<8x1xf32>
    %19 = math.exp %18 : vector<8x1xf32>
    %20 = vector.broadcast %17 : vector<8x1xf32> to vector<8x8xf32>
    %21 = arith.subf %13, %20 : vector<8x8xf32>
    %22 = math.exp %21 : vector<8x8xf32>
    %c0_6 = arith.constant 0 : index
    %c0_7 = arith.constant 0 : index
    %23 = vector.load %arg5[%c0_6, %c0_7] : memref<8x1xf32, #tpu.memory_space<vmem>>, vector<8x1xf32>
    %24 = arith.mulf %19, %23 : vector<8x1xf32>
    %cst_8 = arith.constant dense<0.000000e+00> : vector<8xf32>
    %25 = vector.multi_reduction <add>, %22, %cst_8 [1] : vector<8x8xf32> to vector<8xf32>
    %26 = vector.shape_cast %25 : vector<8xf32> to vector<8x1xf32>
    %27 = arith.addf %24, %26 : vector<8x1xf32>
    %c0_9 = arith.constant 0 : index
    %c0_10 = arith.constant 0 : index
    %28 = vector.load %arg5[%c0_9, %c0_10] : memref<8x1xf32, #tpu.memory_space<vmem>>, vector<8x1xf32>
    tpu.vector_store %arg5[%c0_9, %c0_10], %27 {strides = array<i32>} : memref<8x1xf32, #tpu.memory_space<vmem>>, vector<8x1xf32>,
    %c0_11 = arith.constant 0 : index
    %c0_12 = arith.constant 0 : index
    %29 = vector.load %arg4[%c0_11, %c0_12] : memref<8x1xf32, #tpu.memory_space<vmem>>, vector<8x1xf32>
    tpu.vector_store %arg4[%c0_11, %c0_12], %17 {strides = array<i32>} : memref<8x1xf32, #tpu.memory_space<vmem>>, vector<8x1xf32>,
    %c8_i32_13 = arith.constant 8 : i32
    %30 = arith.muli %arg0, %c8_i32_13 : i32
    %c1_i32 = arith.constant 1 : i32
    %31 = arith.addi %arg1, %c1_i32 : i32
    %c8_i32_14 = arith.constant 8 : i32
    %32 = arith.muli %31, %c8_i32_14 : i32
    %33 = arith.cmpi slt, %30, %32 : i32
    %c8_i32_15 = arith.constant 8 : i32
    %34 = arith.muli %arg1, %c8_i32_15 : i32
    %c1_i32_16 = arith.constant 1 : i32
    %35 = arith.addi %arg0, %c1_i32_16 : i32
    %c8_i32_17 = arith.constant 8 : i32
    %36 = arith.muli %35, %c8_i32_17 : i32
    %37 = arith.cmpi slt, %34, %36 : i32
    %38 = arith.andi %33, %37 : i1
    %39 = arith.extui %38 : i1 to i32
    %c0_i32_18 = arith.constant 0 : i32
    %40 = arith.cmpi ne, %39, %c0_i32_18 : i32
    scf.if %40 {
      %c8_i32_21 = arith.constant 8 : i32
      %44 = arith.muli %arg0, %c8_i32_21 : i32
      %45 = tpu.iota {dimensions = array<i32: 0>} : vector<8x1xi32>
      %46 = vector.broadcast %44 : i32 to vector<8x1xi32>
      %47 = arith.addi %46, %45 : vector<8x1xi32>
      %48 = vector.broadcast %47 : vector<8x1xi32> to vector<8x8xi32>
      %49 = vector.broadcast %7 : vector<1x8xi32> to vector<8x8xi32>
      %50 = arith.cmpi eq, %48, %49 : vector<8x8xi32>
      %c0_22 = arith.constant 0 : index
      %c0_23 = arith.constant 0 : index
      %51 = vector.load %arg6[%c0_22, %c0_23] : memref<8x1xf32, #tpu.memory_space<vmem>>, vector<8x1xf32>
      %cst_24 = arith.constant 0.000000e+00 : f32
      %52 = vector.broadcast %cst_24 : f32 to vector<8x8xf32>
      %53 = arith.select %50, %13, %52 : vector<8x8xi1>, vector<8x8xf32>
      %cst_25 = arith.constant dense<0.000000e+00> : vector<8xf32>
      %54 = vector.multi_reduction <add>, %53, %cst_25 [1] : vector<8x8xf32> to vector<8xf32>
      %55 = vector.shape_cast %54 : vector<8xf32> to vector<8x1xf32>
      %56 = arith.addf %51, %55 : vector<8x1xf32>
      %c0_26 = arith.constant 0 : index
      %c0_27 = arith.constant 0 : index
      %57 = vector.load %arg6[%c0_26, %c0_27] : memref<8x1xf32, #tpu.memory_space<vmem>>, vector<8x1xf32>
      tpu.vector_store %arg6[%c0_26, %c0_27], %56 {strides = array<i32>} : memref<8x1xf32, #tpu.memory_space<vmem>>, vector<8x1xf32>,
    } else {
    }
    %c0_i32_19 = arith.constant 0 : i32
    %41 = arith.cmpi eq, %arg1, %c0_i32_19 : i32
    %42 = arith.extui %41 : i1 to i32
    %c0_i32_20 = arith.constant 0 : i32
    %43 = arith.cmpi ne, %42, %c0_i32_20 : i32
    scf.if %43 {
      %c0_21 = arith.constant 0 : index
      %c0_22 = arith.constant 0 : index
      %44 = vector.load %arg4[%c0_21, %c0_22] : memref<8x1xf32, #tpu.memory_space<vmem>>, vector<8x1xf32>
      %c0_23 = arith.constant 0 : index
      %c0_24 = arith.constant 0 : index
      %45 = vector.load %arg5[%c0_23, %c0_24] : memref<8x1xf32, #tpu.memory_space<vmem>>, vector<8x1xf32>
      %46 = math.log %45 : vector<8x1xf32>
      %47 = arith.addf %44, %46 : vector<8x1xf32>
      %c8_i32_25 = arith.constant 8 : i32
      %48 = arith.muli %arg0, %c8_i32_25 : i32
      %49 = tpu.iota {dimensions = array<i32: 0>} : vector<8x1xi32>
      %50 = vector.broadcast %48 : i32 to vector<8x1xi32>
      %51 = arith.addi %50, %49 : vector<8x1xi32>
      %c8_i32_26 = arith.constant 8 : i32
      %52 = vector.broadcast %c8_i32_26 : i32 to vector<8x1xi32>
      %53 = arith.cmpi slt, %51, %52 : vector<8x1xi32>
      %c0_27 = arith.constant 0 : index
      %c0_28 = arith.constant 0 : index
      %54 = vector.load %arg6[%c0_27, %c0_28] : memref<8x1xf32, #tpu.memory_space<vmem>>, vector<8x1xf32>
      %55 = arith.subf %47, %54 : vector<8x1xf32>
      %cst_29 = arith.constant 0.000000e+00 : f32
      %56 = vector.broadcast %cst_29 : f32 to vector<8x1xf32>
      %57 = arith.select %53, %55, %56 : vector<8x1xi1>, vector<8x1xf32>
      %58 = vector.shape_cast %57 : vector<8x1xf32> to vector<1x8x1xf32>
      %cst_30 = arith.constant dense<0.000000e+00> : vector<1xf32>
      %59 = vector.multi_reduction <add>, %58, %cst_30 [1, 2] : vector<1x8x1xf32> to vector<1xf32>
      %60 = vector.shape_cast %59 : vector<1xf32> to vector<1x1x1xf32>
      %61 = vector.extract %60[0, 0, 0] : f32 from vector<1x1x1xf32>
      %62 = vector.broadcast %61 : f32 to vector<1x8x128xf32>
      %c0_31 = arith.constant 0 : index
      %c0_32 = arith.constant 0 : index
      %c0_33 = arith.constant 0 : index
      %63 = vector.load %arg3[%c0_31, %c0_32, %c0_33] : memref<1x8x128xf32, #tpu.memory_space<vmem>>, vector<1x8x128xf32>
      tpu.vector_store %arg3[%c0_31, %c0_32, %c0_33], %62 {strides = array<i32>} : memref<1x8x128xf32, #tpu.memory_space<vmem>>, vector<1x8x128xf32>,
    } else {
    }
    return
  }
  func.func @transform_0(%arg0: i32, %arg1: i32) -> (i32, i32) {
    %c0_i32 = arith.constant 0 : i32
    return %arg0, %arg1 : i32, i32
  }
  func.func @transform_1(%arg0: i32, %arg1: i32) -> (i32, i32, i32) {
    %c0_i32 = arith.constant 0 : i32
    %c0_i32_0 = arith.constant 0 : i32
    %c0_i32_1 = arith.constant 0 : i32
    return %arg0, %c0_i32, %c0_i32_0 : i32, i32, i32
  }
}

</mosaic_0001>

<llo_original>
// kernel: tpu_custom_call.1
$region0: #{tpu_custom_call.1}
  #allocation0 [shape = 'u32[]', space=smem, size = 0x4, offset = 0x4, fixed_abs, tag = 'smem constant byte address 0x4 - core index']
  #allocation1 [shape = 'u32[144,128]{1,0:T(1,128)}', space=vmem, size = 0x12000, scoped, tag = 'internal scratch']
  #allocation2 [shape = 'f32[8,1]{1,0:T(8,128)}', space=vmem, size = 0x1000, scoped, tag = 'scratch operand']
  #allocation3 [shape = 'f32[8,1]{1,0:T(8,128)}', space=vmem, size = 0x1000, scoped, tag = 'scratch operand']
  #allocation4 [shape = 'f32[8,1]{1,0:T(8,128)}', space=vmem, size = 0x1000, scoped, tag = 'scratch operand']
  %s0 = inlined_call_operand.hbm [shape: f32[8,8], index: 0, kind: input, shape index: {}]
  %s1 = inlined_call_operand.hbm [shape: f32[1,8,128], index: 1, kind: output, shape index: {}]
  %s2 = sld [smem:[#allocation0]]
  $region30: #{tpu_custom_call.1} parent=0
    _
  %s4 = ssub.s32 1, %s2
  %s5 = scalar_select 0, %s4, %s2
  $region1: #{tpu_custom_call.1} parent=0
    #allocation5 [shape = 'u8[4096]{0}', space=vmem, size = 0x1000, scoped, tag = 'input window, operand 0, single buffered']
    #allocation6 [shape = 's32[1]{0}', space=sflag, size = 0x4, scoped, tag = 'scoped memory for tpu_custom_call.1']
    #allocation7 [shape = 's32[1]{0}', space=sflag, size = 0x4, scoped, tag = 'scoped memory for tpu_custom_call.1']
    #allocation8 [shape = 'u8[4096]{0}', space=vmem, size = 0x1000, scoped, tag = 'output window, operand 0, single buffered']
    %6 = vsyncpa [#allocation6], 0
    %7 = vsyncpa [#allocation7], 0
    // Predicated region
    $region2: #{tpu_custom_call.1} parent=1 // pred_check
      _
    $region3: #{tpu_custom_call.1} parent=1 // pred_check_branch
      %9 = sbr.rel (0) target = $region5
    $region4: #{tpu_custom_call.1} parent=1 // pred_region
      %s11 = ssub.s32 128, 128
      %12 = vsyncadd [#allocation6], %s11
      %s14 = sshll.u32 [#allocation5], 4
      %s15 = int_to_ptr.vmem [resolvable:$true] %s14
      %17 = dma.hbm_to_vmem [thread:$0]  %s0, 128, %s15, [#allocation6]
    $region5: #{tpu_custom_call.1} parent=1 // pred_fallthru
      _
    // Predicated region
    $region6: #{tpu_custom_call.1} parent=1 // pred_check
      _
    $region7: #{tpu_custom_call.1} parent=1 // pred_check_branch
      %19 = sbr.rel (0) target = $region9
    $region8: #{tpu_custom_call.1} parent=1 // pred_region
      %20 = dma.done [#allocation6], 128
    $region9: #{tpu_custom_call.1} parent=1 // pred_fallthru
      _
    %p21 = scmp.eq.s32.totalorder 0, 0
    // Predicated region
    $region10: #{tpu_custom_call.1} parent=1 // pred_check
      %p22 = pneg %p21
    $region11: #{tpu_custom_call.1} parent=1 // pred_check_branch
      %24 = sbr.rel (%p22) target = $region13
    $region12: #{tpu_custom_call.1} parent=1 // pred_region
      %vm25 = vcmask 7168
      %26 = vst.msk [vmem:[#allocation2] sm:$0xff] %vm25, -1e+30
      %27 = vst.msk [vmem:[#allocation3] sm:$0xff] %vm25, 0.0
      %28 = vst.msk [vmem:[#allocation4] sm:$0xff] %vm25, 0.0
    $region13: #{tpu_custom_call.1} parent=1 // pred_fallthru
      _
    %v29 = vld [vmem:[#allocation5] sm:$0xff]
    %s30 = smul.u32 0, 8
    %v31 = vlaneseq
    %v32 = vand.u32 %v31, 127
    %v33 = vstv %s30
    %v34 = vadd.s32 %v33, %v32
    %vm35 = vcmp.lt.s32.totalorder %v34, 8
    %v36 = vsel %vm35, 1, 0
    %vm37 = vcmp.eq.s32.totalorder %v36, 1
    %v38 = vsel %vm37, %v29, -1e+30
    %v39 = vld [vmem:[#allocation2] sm:$0xff]
    %vm40 = vcmask 64512
    %v41 = vsel %vm40, %v38, -inf
    %42 = vmax.xlane.f32.xlu0 %v41
    %v43 = vpop.xlane.xlu0 %42
    %v44 = vmax.f32 %v39, %v43
    %v45 = vsub.f32 %v39, %v44
    %v46 = vmul.f32 %v45, 1.442695
    %v47 = vpow.pop %v46
    %49 = vset.pattern.permute.xlu0 0
    %50 = vperm.xlu0 %49, %v44
    %v51 = vpop.permute.xlu0 %50
    %v53 = vsub.f32 %v38, %v51
    %v54 = vmul.f32 %v53, 1.442695
    %v55 = vpow.pop %v54
    %v56 = vld [vmem:[#allocation3] sm:$0xff]
    %v57 = vmul.f32 %v47, %v56
    %v58 = vsel %vm40, %v55, 0.0
    %59 = vadd.xlane.f32.xlu0 %v58
    %v60 = vpop.xlane.xlu0 %59
    %v61 = vadd.f32 %v57, %v60
    %vm62 = vcmask 7168
    %63 = vst.msk [vmem:[#allocation3] sm:$0xff] %vm62, %v61
    %64 = vst.msk [vmem:[#allocation2] sm:$0xff] %vm62, %v44
    %s65 = smul.u32 0, 8
    %s66 = sadd.s32 0, 1
    %s67 = smul.u32 %s66, 8
    %p68 = scmp.lt.s32.totalorder %s65, %s67
    %s69 = sadd.s32 0, 1
    %s70 = smul.u32 %s69, 8
    %p71 = scmp.lt.s32.totalorder %s30, %s70
    %p72 = pnand %p68, %p71
    %p73 = pneg %p72
    // Predicated region
    $region14: #{tpu_custom_call.1} parent=1 // pred_check
      _
    $region15: #{tpu_custom_call.1} parent=1 // pred_check_branch
      %75 = sbr.rel (%p72) target = $region17
    $region16: #{tpu_custom_call.1} parent=1 // pred_region
      %v76 = vlaneseq
      %v77 = vshrl.u32 %v76, 7
      %v78 = vstv %s65
      %v79 = vadd.s32 %v78, %v77
      %vm80 = vcmp.eq.s32.totalorder %v79, %v34
      %v81 = vld [vmem:[#allocation4] sm:$0xff]
      %v82 = vsel %vm80, %v38, 0.0
      %v83 = vsel %vm40, %v82, 0.0
      %84 = vadd.xlane.f32.xlu0 %v83
      %v85 = vpop.xlane.xlu0 %84
      %v86 = vadd.f32 %v81, %v85
      %87 = vst.msk [vmem:[#allocation4] sm:$0xff] %vm62, %v86
    $region17: #{tpu_custom_call.1} parent=1 // pred_fallthru
      _
    // Predicated region
    $region18: #{tpu_custom_call.1} parent=1 // pred_check
      %p88 = pneg %p21
    $region19: #{tpu_custom_call.1} parent=1 // pred_check_branch
      %90 = sbr.rel (%p88) target = $region21
    $region20: #{tpu_custom_call.1} parent=1 // pred_region
      %v91 = vld [vmem:[#allocation2] sm:$0xff]
      %v92 = vld [vmem:[#allocation3] sm:$0xff]
      %v93 = vlog2.pop %v92
      %v94 = vmul.f32 %v93, 0.6931472
      %v95 = vadd.f32 %v91, %v94
      %v96 = vlaneseq
      %v97 = vshrl.u32 %v96, 7
      %v98 = vstv %s65
      %v99 = vadd.s32 %v98, %v97
      %vm100 = vcmp.lt.s32.totalorder %v99, 8
      %v101 = vld [vmem:[#allocation4] sm:$0xff]
      %v102 = vsub.f32 %v95, %v101
      %v103 = vsel %vm100, %v102, 0.0
      %v104 = vsel %vm62, %v103, 0.0
      %105 = vadd.xlane.f32.xlu0 %v104
      %v106 = vpop.xlane.xlu0 %105
      %v107 = vrot.slane %v106, 4
      %v108 = vadd.f32 %v106, %v107
      %v109 = vrot.slane %v108, 2
      %v110 = vadd.f32 %v108, %v109
      %v111 = vrot.slane %v110, 1
      %v112 = vadd.f32 %v110, %v111
      %s113 = vtos %v112
      %v114 = vstv %s113
      %115 = vst [vmem:[#allocation8] sm:$0xff] %v114
    $region21: #{tpu_custom_call.1} parent=1 // pred_fallthru
      _
    // Predicated region
    $region22: #{tpu_custom_call.1} parent=1 // pred_check
      _
    $region23: #{tpu_custom_call.1} parent=1 // pred_check_branch
      %117 = sbr.rel (0) target = $region25
    $region24: #{tpu_custom_call.1} parent=1 // pred_region
      %s119 = ssub.s32 128, 128
      %120 = vsyncadd [#allocation7], %s119
      %s122 = sshll.u32 [#allocation8], 4
      %s123 = int_to_ptr.vmem [resolvable:$true] %s122
      %125 = dma.vmem_to_hbm [thread:$0]  %s123, 128, %s1, [#allocation7]
    $region25: #{tpu_custom_call.1} parent=1 // pred_fallthru
      _
    // Predicated region
    $region26: #{tpu_custom_call.1} parent=1 // pred_check
      _
    $region27: #{tpu_custom_call.1} parent=1 // pred_check_branch
      %127 = sbr.rel (0) target = $region29
    $region28: #{tpu_custom_call.1} parent=1 // pred_region
      %128 = dma.done [#allocation7], 128
    $region29: #{tpu_custom_call.1} parent=1 // pred_fallthru
      _
    %129 = vsyncpa [#allocation6], 1
    %130 = vsyncpa [#allocation7], 1

</llo_original>
